<compile_context>
chip_gen: v6e
topology: v6e:2x2x1
jax: 0.10.0
libtpu: 0.0.40
codegen_flags: <defaults>
</compile_context>

<pallas_src>
import jax
import jax.numpy as jnp
from jax.experimental import pallas as pl
from jax.experimental.pallas import tpu as pltpu

C_IN = 512        # Conv2d in_channels
C_OUT = 1         # Conv2d out_channels
OUT_SIZE = 256    # F.interpolate target spatial size
MAX_TILE_P = 2048  # cap: 512*2048*4 B = 4 MiB / tile, 8 MiB double-buffered (fits v5e default scoped VMEM)


def conv1x1_kernel(w_ref, b_ref, x_ref, o_ref):
    # w_ref: (C_OUT, C_IN) VMEM (resident)
    # b_ref: (C_OUT,)      SMEM scalar
    # x_ref: (C_IN, tile_p) VMEM activation tile (channels on sublanes, pixels on lanes)
    # o_ref: (C_OUT, tile_p) VMEM lane-dense output tile
    acc = jnp.dot(w_ref[...], x_ref[...], preferred_element_type=jnp.float32)
    o_ref[...] = acc + b_ref[0]          # scalar bias broadcast over lanes


def nearest_interpolate_nchw(x, out_size):
    # Matches torch.nn.functional.interpolate(x, out_size), default 'nearest':
    # src_idx = floor(dst_idx * in_size / out_size). Integer math is exact.
    _, _, h, w = x.shape
    idx_h = (jnp.arange(out_size, dtype=jnp.int32) * h) // out_size
    idx_w = (jnp.arange(out_size, dtype=jnp.int32) * w) // out_size
    x = jnp.take(x, idx_h, axis=2)
    x = jnp.take(x, idx_w, axis=3)
    return x


@jax.jit
def ddff_decoder_dummy_forward(x, x_cat, w, b):
    """x: (N, 512, h, w) float32; x_cat ignored; w: (1, 512, 1, 1); b: (1,)."""
    del x_cat  # unused, exactly like the PyTorch module
    n, c, h, w_sp = x.shape
    assert c == C_IN

    # --- conv on the SMALL pre-upsample activations (commutes with nearest) ---
    p = h * w_sp
    # Pad the pixel axis only to the next multiple of 128 lanes.
    p_pad = ((p + 127) // 128) * 128
    tile_p = min(MAX_TILE_P, p_pad)
    # Ensure the (tiny) pad makes p_pad an exact multiple of tile_p.
    p_pad = ((p_pad + tile_p - 1) // tile_p) * tile_p

    x_flat = x.reshape(n, C_IN, p)                       # native layout, no transpose
    if p_pad != p:
        x_flat = jnp.pad(x_flat, ((0, 0), (0, 0), (0, p_pad - p)))

    w2 = w.reshape(C_OUT, C_IN).astype(jnp.float32)      # (1, 512)
    b1 = b.reshape(C_OUT).astype(jnp.float32)            # (1,)  -> SMEM scalar

    grid_p = p_pad // tile_p
    cost = pl.CostEstimate(
        flops=2 * n * C_IN * C_OUT * p_pad,
        transcendentals=0,
        bytes_accessed=(n * C_IN * p_pad + C_OUT * C_IN + n * C_OUT * p_pad) * 4,
    )

    out_flat = pl.pallas_call(
        conv1x1_kernel,
        out_shape=jax.ShapeDtypeStruct((n, C_OUT, p_pad), jnp.float32),
        grid_spec=pltpu.PrefetchScalarGridSpec(
            num_scalar_prefetch=0,
            grid=(n, grid_p),
            in_specs=[
                # weight: resident, never re-DMA'd
                pl.BlockSpec((C_OUT, C_IN), lambda nb, i: (0, 0)),
                # bias: full (1,) array in SMEM
                pl.BlockSpec(memory_space=pltpu.MemorySpace.SMEM),
                # activation tile: grid over batch (squeezed) and pixel tiles
                pl.BlockSpec((pl.Squeezed(), C_IN, tile_p), lambda nb, i: (nb, 0, i)),
            ],
            out_specs=pl.BlockSpec(
                (pl.Squeezed(), C_OUT, tile_p), lambda nb, i: (nb, 0, i)),
        ),
        compiler_params=pltpu.CompilerParams(
            dimension_semantics=("parallel", "parallel")),
        cost_estimate=cost,
    )(w2, b1, x_flat)

    # (N, 1, p_pad) -> (N, 1, h, w), then cheap single-channel nearest upsample.
    # (Replication is left to XLA gathers fused under jit; fusing it into the
    #  kernel's output write was judged not worth the extra complexity here.)
    y_small = out_flat[:, :, :p].reshape(n, C_OUT, h, w_sp)
    return nearest_interpolate_nchw(y_small, OUT_SIZE)


if __name__ == "__main__":
    key = jax.random.PRNGKey(0)
    k_x, k_xcat, k_w, k_b = jax.random.split(key, 4)

    # Small spatial input; channels must be 512 to match Conv2d(512, 1, 1).
    N, H, W = 2, 8, 8
    x = jax.random.normal(k_x, (N, C_IN, H, W), dtype=jnp.float32)
    x_cat = jax.random.normal(k_xcat, (N, C_IN, 16, 16), dtype=jnp.float32)  # unused

    # Deterministic synthetic parameters: Conv2d(512,1,1) weight (1,512,1,1), bias (1,)
    w = jax.random.normal(k_w, (C_OUT, C_IN, 1, 1), dtype=jnp.float32) * 0.02
    b = jax.random.normal(k_b, (C_OUT,), dtype=jnp.float32) * 0.02

    out = ddff_decoder_dummy_forward(x, x_cat, w, b)
    out = jax.block_until_ready(out)
    assert out.shape == (N, C_OUT, OUT_SIZE, OUT_SIZE), out.shape

    # Reference in plain JAX in the ORIGINAL order (interpolate, then 1x1 conv)
    # to validate both the conv and the conv/upsample reordering.
    x_up = nearest_interpolate_nchw(x, OUT_SIZE)
    ref = jax.lax.conv_general_dilated(
        x_up, w, window_strides=(1, 1), padding="VALID",
        dimension_numbers=("NCHW", "OIHW", "NCHW")) + b.reshape(1, C_OUT, 1, 1)

    assert jnp.allclose(out, ref, rtol=1e-5, atol=1e-5), \
        float(jnp.max(jnp.abs(out - ref)))
    print("KERNEL_OK")
</pallas_src>

<mosaic_0001>
module attributes {stable_mosaic.version = 11 : i64} {
  func.func @conv1x1_kernel(%arg0: i32, %arg1: i32, %arg2: memref<1x512xf32, #tpu.memory_space<vmem>>, %arg3: memref<1xf32, #tpu.memory_space<smem>>, %arg4: memref<1x512x128xf32, #tpu.memory_space<vmem>>, %arg5: memref<1x1x128xf32, #tpu.memory_space<vmem>>) attributes {dimension_semantics = [#tpu.dimension_semantics<parallel>, #tpu.dimension_semantics<parallel>], iteration_bounds = array<i64: 2, 1>, scalar_prefetch = 0 : i64, scratch_operands = 0 : i64, tpu.core_type = #tpu.core_type<tc>, window_params = [{pipeline_mode = #tpu.pipeline_mode<synchronous>, transform_indices = @transform_0, window_bounds = array<i64: 1, 512>}, {transform_indices = @transform_1, window_bounds = array<i64: 1>}, {transform_indices = @transform_2, window_bounds = array<i64: 1, 512, 128>}, {transform_indices = @transform_3, window_bounds = array<i64: 1, 1, 128>}]} {
    %c0 = arith.constant 0 : index
    %c0_0 = arith.constant 0 : index
    %0 = vector.load %arg2[%c0, %c0_0] : memref<1x512xf32, #tpu.memory_space<vmem>>, vector<1x512xf32>
    %c0_1 = arith.constant 0 : index
    %c0_2 = arith.constant 0 : index
    %c0_3 = arith.constant 0 : index
    %1 = vector.load %arg4[%c0_1, %c0_2, %c0_3] : memref<1x512x128xf32, #tpu.memory_space<vmem>>, vector<1x512x128xf32>
    %2 = vector.shape_cast %1 : vector<1x512x128xf32> to vector<512x128xf32>
    %cst = arith.constant dense<0.000000e+00> : vector<1x128xf32>
    %3 = tpu.matmul %0, %2, %cst {dimension_numbers = #tpu.dot_dimension_numbers<[1], [0], [0], [1], [0, 0, 1, 1], [], []>} : vector<1x512xf32>, vector<512x128xf32>, vector<1x128xf32> -> vector<1x128xf32>
    %c0_4 = arith.constant 0 : index
    %4 = memref.load %arg3[%c0_4] : memref<1xf32, #tpu.memory_space<smem>>
    %5 = vector.broadcast %4 : f32 to vector<1x128xf32>
    %6 = arith.addf %3, %5 : vector<1x128xf32>
    %c0_5 = arith.constant 0 : index
    %c0_6 = arith.constant 0 : index
    %c0_7 = arith.constant 0 : index
    %7 = vector.load %arg5[%c0_5, %c0_6, %c0_7] : memref<1x1x128xf32, #tpu.memory_space<vmem>>, vector<1x1x128xf32>
    %8 = vector.shape_cast %7 : vector<1x1x128xf32> to vector<1x128xf32>
    %9 = vector.shape_cast %6 : vector<1x128xf32> to vector<1x1x128xf32>
    tpu.vector_store %arg5[%c0_5, %c0_6, %c0_7], %9 {strides = array<i32>} : memref<1x1x128xf32, #tpu.memory_space<vmem>>, vector<1x1x128xf32>,
    return
  }
  func.func @transform_0(%arg0: i32, %arg1: i32) -> (i32, i32) {
    %c0_i32 = arith.constant 0 : i32
    %c0_i32_0 = arith.constant 0 : i32
    %c0_i32_1 = arith.constant 0 : i32
    return %c0_i32, %c0_i32_0 : i32, i32
  }
  func.func @transform_1(%arg0: i32, %arg1: i32) -> i32 {
    %c0_i32 = arith.constant 0 : i32
    %c0_i32_0 = arith.constant 0 : i32
    return %c0_i32 : i32
  }
  func.func @transform_2(%arg0: i32, %arg1: i32) -> (i32, i32, i32) {
    %c0_i32 = arith.constant 0 : i32
    %c0_i32_0 = arith.constant 0 : i32
    return %arg0, %c0_i32, %arg1 : i32, i32, i32
  }
  func.func @transform_3(%arg0: i32, %arg1: i32) -> (i32, i32, i32) {
    %c0_i32 = arith.constant 0 : i32
    %c0_i32_0 = arith.constant 0 : i32
    return %arg0, %c0_i32, %arg1 : i32, i32, i32
  }
}

</mosaic_0001>

<llo_original>
// kernel: ddff_decoder_dummy_forward.1
$region0: #{ddff_decoder_dummy_forward.1}
  #allocation0 [shape = 'u32[]', space=smem, size = 0x4, offset = 0x4, fixed_abs, tag = 'smem constant byte address 0x4 - core index']
  #allocation1 [shape = 'u32[144,128]{1,0:T(1,128)}', space=vmem, size = 0x12000, scoped, tag = 'internal scratch']
  #allocation2 [shape = 'f32[1]{0:T(128)S(6)}', space=smem, size = 0x200, scoped, tag = 'scoped memory for ddff_decoder_dummy_forward.1']
  %s0 = inlined_call_operand.vmem [shape: f32[1,512], index: 0, kind: input, shape index: {}]
  %s1 = inlined_call_operand.<no memory space> [shape: f32[1], index: 1, kind: input, shape index: {}]
  %s2 = inlined_call_operand.vmem [shape: f32[2,512,128], index: 2, kind: input, shape index: {}]
  %s3 = inlined_call_operand.vmem [shape: f32[2,1,128], index: 3, kind: output, shape index: {}]
  %s4 = sld [smem:[#allocation0]]
  $region45: #{ddff_decoder_dummy_forward.1} parent=0
    _
  %s6 = ssub.s32 1, %s4
  %s7 = scalar_select 0, %s6, %s4
  %8 = sst [smem:[#allocation2]] %s1
  loop: start=0, step=1, limit=4
  $region2: #{ddff_decoder_dummy_forward.1} parent=0 // loop_pre_header
    _
  $region3: #{ddff_decoder_dummy_forward.1} parent=0 // loop_header
    %s10 = sphi 0, %s14
    %p11 = scmp.ge.s32.totalorder %s10, 4
    %s17 = sphi 0, %s29
    %s18 = sphi 0, %s25
    %s19 = sphi 0, %s17
    %s20 = sphi 0, %s18
    %s21 = sphi 0, %s19
    %s22 = sphi 0, %s20
    %s30 = sphi 0, %s30
    %s32 = sphi 0, %s30
    %s33 = sphi 0, %s32
    %s47 = sphi 0, %s33
    %s51 = sphi 0, %s51
    %s53 = sphi 0, %s51
    %s54 = sphi 0, %s53
    %s68 = sphi 0, %s54
    %s76 = sphi 0, %s78
    %s79 = sphi 0, %s76
    %s80 = sphi 0, %s79
    %s96 = sphi 0, %s80
    %s104 = sphi 0, %s106
    %s107 = sphi 0, %s104
    %s108 = sphi 0, %s107
    %s124 = sphi 0, %s108
  $region4: #{ddff_decoder_dummy_forward.1} parent=0 // loop_header_branch
    %13 = sbr.rel (%p11) target = $region8
  $region5: #{ddff_decoder_dummy_forward.1} parent=0 // loop_body
    %s15 = ssub.s32 %s10, 1
    %s16 = ssub.s32 %s10, 2
    %s23 = sadd.s32 1, %s18
    %p24 = scmp.ge.s32.totalorder %s23, 1
    %s25 = scalar_select %p24, 0, %s23
    %s26 = sadd.s32 1, %s17
    %s27 = scalar_select %p24, %s26, %s17
    %p28 = scmp.ge.s32.totalorder %s27, 2
    %s29 = scalar_select %p28, 0, %s27
    %s31 = sadd.s32 %s30, 1
    %p34 = scmp.eq.s32.totalorder %s10, 1
    %p35 = scmp.ne.s32.totalorder %s30, %s32
    %p36 = scmp.eq.s32.totalorder %s10, 0
    %p37 = por %p35, %p36
    %p38 = scmp.ne.s32.totalorder %s30, %s32
    %p39 = scmp.eq.s32.totalorder %s15, 1
    %p40 = por %p38, %p39
    %p41 = scmp.ne.s32.totalorder %s32, %s33
    %p42 = scmp.eq.s32.totalorder %s15, 0
    %p43 = por %p41, %p42
    %p44 = scmp.ne.s32.totalorder %s32, %s33
    %p45 = scmp.eq.s32.totalorder %s16, 1
    %p46 = por %p44, %p45
    %p48 = scmp.ne.s32.totalorder %s33, %s47
    %p49 = scmp.eq.s32.totalorder %s16, 0
    %p50 = por %p48, %p49
    %s52 = sadd.s32 %s51, 1
    %p55 = scmp.eq.s32.totalorder %s10, 1
    %p56 = scmp.ne.s32.totalorder %s51, %s53
    %p57 = scmp.eq.s32.totalorder %s10, 0
    %p58 = por %p56, %p57
    %p59 = scmp.ne.s32.totalorder %s51, %s53
    %p60 = scmp.eq.s32.totalorder %s15, 1
    %p61 = por %p59, %p60
    %p62 = scmp.ne.s32.totalorder %s53, %s54
    %p63 = scmp.eq.s32.totalorder %s15, 0
    %p64 = por %p62, %p63
    %p65 = scmp.ne.s32.totalorder %s53, %s54
    %p66 = scmp.eq.s32.totalorder %s16, 1
    %p67 = por %p65, %p66
    %p69 = scmp.ne.s32.totalorder %s54, %s68
    %p70 = scmp.eq.s32.totalorder %s16, 0
    %p71 = por %p69, %p70
    %s72 = ssub.s32 %s17, %s29
    %s73 = ssub.s32 %s18, %s25
    %s74 = sor.u32 %s72, %s73
    %p75 = scmp.eq.s32.totalorder %s74, 0
    %s77 = sadd.s32 %s76, 1
    %s78 = scalar_select %p75, %s76, %s77
    %p81 = pneg %p75
    %p82 = scmp.eq.s32.totalorder %s10, 1
    %p83 = por %p81, %p82
    %p84 = scmp.ne.s32.totalorder %s76, %s79
    %p85 = scmp.eq.s32.totalorder %s10, 0
    %p86 = por %p84, %p85
    %p87 = scmp.ne.s32.totalorder %s76, %s79
    %p88 = scmp.eq.s32.totalorder %s15, 1
    %p89 = por %p87, %p88
    %p90 = scmp.ne.s32.totalorder %s79, %s80
    %p91 = scmp.eq.s32.totalorder %s15, 0
    %p92 = por %p90, %p91
    %p93 = scmp.ne.s32.totalorder %s79, %s80
    %p94 = scmp.eq.s32.totalorder %s16, 1
    %p95 = por %p93, %p94
    %p97 = scmp.ne.s32.totalorder %s80, %s96
    %p98 = scmp.eq.s32.totalorder %s16, 0
    %p99 = por %p97, %p98
    %s100 = ssub.s32 %s17, %s29
    %s101 = ssub.s32 %s18, %s25
    %s102 = sor.u32 %s100, %s101
    %p103 = scmp.eq.s32.totalorder %s102, 0
    %s105 = sadd.s32 %s104, 1
    %s106 = scalar_select %p103, %s104, %s105
    %p109 = pneg %p103
    %p110 = scmp.eq.s32.totalorder %s10, 1
    %p111 = por %p109, %p110
    %p112 = scmp.ne.s32.totalorder %s104, %s107
    %p113 = scmp.eq.s32.totalorder %s10, 0
    %p114 = por %p112, %p113
    %p115 = scmp.ne.s32.totalorder %s104, %s107
    %p116 = scmp.eq.s32.totalorder %s15, 1
    %p117 = por %p115, %p116
    %p118 = scmp.ne.s32.totalorder %s107, %s108
    %p119 = scmp.eq.s32.totalorder %s15, 0
    %p120 = por %p118, %p119
    %p121 = scmp.ne.s32.totalorder %s107, %s108
    %p122 = scmp.eq.s32.totalorder %s16, 1
    %p123 = por %p121, %p122
    %p125 = scmp.ne.s32.totalorder %s108, %s124
    %p126 = scmp.eq.s32.totalorder %s16, 0
    %p127 = por %p125, %p126
    %p128 = scmp.le.s32.totalorder 1, %s10
    %p129 = scmp.lt.s32.totalorder %s10, 3
    %p130 = pnand %p128, %p129
    %p131 = pneg %p130
    // Predicated region
    $region9: #{ddff_decoder_dummy_forward.1} parent=5 // pred_check
      _
    $region10: #{ddff_decoder_dummy_forward.1} parent=5 // pred_check_branch
      %133 = sbr.rel (%p130) target = $region12
    $region11: #{ddff_decoder_dummy_forward.1} parent=5 // pred_region
      %s134 = ssub.s32 %s10, 1
      // Predicated region
      $region13: #{ddff_decoder_dummy_forward.1} parent=11 // pred_check
        %p135 = pneg %p43
      $region14: #{ddff_decoder_dummy_forward.1} parent=11 // pred_check_branch
        %137 = sbr.rel (%p135) target = $region16
      $region15: #{ddff_decoder_dummy_forward.1} parent=11 // pred_region
        _
      $region16: #{ddff_decoder_dummy_forward.1} parent=11 // pred_fallthru
        _
      // Predicated region
      $region17: #{ddff_decoder_dummy_forward.1} parent=11 // pred_check
        %p138 = pneg %p64
      $region18: #{ddff_decoder_dummy_forward.1} parent=11 // pred_check_branch
        %140 = sbr.rel (%p138) target = $region20
      $region19: #{ddff_decoder_dummy_forward.1} parent=11 // pred_region
        _
      $region20: #{ddff_decoder_dummy_forward.1} parent=11 // pred_fallthru
        _
    $region12: #{ddff_decoder_dummy_forward.1} parent=5 // pred_fallthru
      _
    %p141 = scmp.lt.s32.totalorder %s10, 2
    // Predicated region
    $region21: #{ddff_decoder_dummy_forward.1} parent=5 // pred_check
      %p142 = pneg %p141
    $region22: #{ddff_decoder_dummy_forward.1} parent=5 // pred_check_branch
      %144 = sbr.rel (%p142) target = $region24
    $region23: #{ddff_decoder_dummy_forward.1} parent=5 // pred_region
      // Predicated region
      $region25: #{ddff_decoder_dummy_forward.1} parent=23 // pred_check
        %p145 = pneg %p86
      $region26: #{ddff_decoder_dummy_forward.1} parent=23 // pred_check_branch
        %147 = sbr.rel (%p145) target = $region28
      $region27: #{ddff_decoder_dummy_forward.1} parent=23 // pred_region
        %p148 = scmp.lt.s32.totalorder %s17, 1
        %s149 = scalar_select %p148, %s17, 1
        %p150 = scmp.lt.s32.totalorder %s18, 0
        %s151 = scalar_select %p150, %s18, 0
        %s152 = smul.addr %s149, 64
        %s153 = sadd.s32 %s151, %s152
        %s154 = smul.addr %s153, 8
        %s155 = scalar_lea.vmem %s2, %s154
      $region28: #{ddff_decoder_dummy_forward.1} parent=23 // pred_fallthru
        _
    $region24: #{ddff_decoder_dummy_forward.1} parent=5 // pred_fallthru
      _
    %p156 = scmp.le.s32.totalorder 1, %s10
    %p157 = scmp.lt.s32.totalorder %s10, 3
    %p158 = pnand %p156, %p157
    %p159 = pneg %p158
    // Predicated region
    $region29: #{ddff_decoder_dummy_forward.1} parent=5 // pred_check
      _
    $region30: #{ddff_decoder_dummy_forward.1} parent=5 // pred_check_branch
      %161 = sbr.rel (%p158) target = $region32
    $region31: #{ddff_decoder_dummy_forward.1} parent=5 // pred_region
      %s162 = ssub.s32 %s10, 1
      %p163 = pneg %p43
      %p164 = pneg %p40
      %p165 = pneg %p64
      %p166 = pneg %p61
      %p167 = scmp.lt.s32.totalorder %s19, 1
      %s168 = scalar_select %p167, %s19, 1
      %p169 = scmp.lt.s32.totalorder %s20, 0
      %s170 = scalar_select %p169, %s20, 0
      %s171 = smul.addr %s168, 64
      %s172 = sadd.s32 %s170, %s171
      %s173 = smul.addr %s172, 8
      %s174 = scalar_lea.vmem %s2, %s173
      %p175 = pneg %p92
      %p176 = pneg %p89
      %p177 = pneg %p120
      %p178 = pneg %p117
      %p179 = scmp.lt.s32.totalorder %s19, 1
      %s180 = scalar_select %p179, %s19, 1
      %p181 = scmp.lt.s32.totalorder %s20, 0
      %s182 = scalar_select %p181, %s20, 0
      %s183 = sadd.s32 %s182, %s180
      %s184 = scalar_lea.vmem %s3, %s183
      %p185 = scmp.lt.s32.totalorder %s19, 1
      %s186 = scalar_select %p185, %s19, 1
      %p187 = scmp.lt.s32.totalorder %s20, 0
      %s188 = scalar_select %p187, %s20, 0
      %s189 = smul.addr %s186, 64
      %s190 = sadd.s32 %s188, %s189
      %s191 = smul.addr %s190, 8
      %s192 = scalar_lea.vmem %s2, %s191
      %p193 = scmp.lt.s32.totalorder %s19, 1
      %s194 = scalar_select %p193, %s19, 1
      %p195 = scmp.lt.s32.totalorder %s20, 0
      %s196 = scalar_select %p195, %s20, 0
      %s197 = sadd.s32 %s196, %s194
      %s198 = scalar_lea.vmem %s3, %s197
      %v199 = vld [vmem:[%s0] sm:$0xf]
      %v200 = vld [vmem:[%s192] sm:$0xff]
      %v201 = vld [vmem:[%s192 + $0x8] sm:$0xff]
      %v202 = vld [vmem:[%s192 + $0x10] sm:$0xff]
      %v203 = vld [vmem:[%s192 + $0x18] sm:$0xff]
      %v204 = vld [vmem:[%s192 + $0x20] sm:$0xff]
      %v205 = vld [vmem:[%s192 + $0x28] sm:$0xff]
      %v206 = vld [vmem:[%s192 + $0x30] sm:$0xff]
      %v207 = vld [vmem:[%s192 + $0x38] sm:$0xff]
      %v208 = vld [vmem:[%s192 + $0x40] sm:$0xff]
      %v209 = vld [vmem:[%s192 + $0x48] sm:$0xff]
      %v210 = vld [vmem:[%s192 + $0x50] sm:$0xff]
      %v211 = vld [vmem:[%s192 + $0x58] sm:$0xff]
      %v212 = vld [vmem:[%s192 + $0x60] sm:$0xff]
      %v213 = vld [vmem:[%s192 + $0x68] sm:$0xff]
      %v214 = vld [vmem:[%s192 + $0x70] sm:$0xff]
      %v215 = vld [vmem:[%s192 + $0x78] sm:$0xff]
      %v216 = vld [vmem:[%s192 + $0x80] sm:$0xff]
      %v217 = vld [vmem:[%s192 + $0x88] sm:$0xff]
      %v218 = vld [vmem:[%s192 + $0x90] sm:$0xff]
      %v219 = vld [vmem:[%s192 + $0x98] sm:$0xff]
      %v220 = vld [vmem:[%s192 + $0xa0] sm:$0xff]
      %v221 = vld [vmem:[%s192 + $0xa8] sm:$0xff]
      %v222 = vld [vmem:[%s192 + $0xb0] sm:$0xff]
      %v223 = vld [vmem:[%s192 + $0xb8] sm:$0xff]
      %v224 = vld [vmem:[%s192 + $0xc0] sm:$0xff]
      %v225 = vld [vmem:[%s192 + $0xc8] sm:$0xff]
      %v226 = vld [vmem:[%s192 + $0xd0] sm:$0xff]
      %v227 = vld [vmem:[%s192 + $0xd8] sm:$0xff]
      %v228 = vld [vmem:[%s192 + $0xe0] sm:$0xff]
      %v229 = vld [vmem:[%s192 + $0xe8] sm:$0xff]
      %v230 = vld [vmem:[%s192 + $0xf0] sm:$0xff]
      %v231 = vld [vmem:[%s192 + $0xf8] sm:$0xff]
      %v232 = vld [vmem:[%s192 + $0x100] sm:$0xff]
      %v233 = vld [vmem:[%s192 + $0x108] sm:$0xff]
      %v234 = vld [vmem:[%s192 + $0x110] sm:$0xff]
      %v235 = vld [vmem:[%s192 + $0x118] sm:$0xff]
      %v236 = vld [vmem:[%s192 + $0x120] sm:$0xff]
      %v237 = vld [vmem:[%s192 + $0x128] sm:$0xff]
      %v238 = vld [vmem:[%s192 + $0x130] sm:$0xff]
      %v239 = vld [vmem:[%s192 + $0x138] sm:$0xff]
      %v240 = vld [vmem:[%s192 + $0x140] sm:$0xff]
      %v241 = vld [vmem:[%s192 + $0x148] sm:$0xff]
      %v242 = vld [vmem:[%s192 + $0x150] sm:$0xff]
      %v243 = vld [vmem:[%s192 + $0x158] sm:$0xff]
      %v244 = vld [vmem:[%s192 + $0x160] sm:$0xff]
      %v245 = vld [vmem:[%s192 + $0x168] sm:$0xff]
      %v246 = vld [vmem:[%s192 + $0x170] sm:$0xff]
      %v247 = vld [vmem:[%s192 + $0x178] sm:$0xff]
      %v248 = vld [vmem:[%s192 + $0x180] sm:$0xff]
      %v249 = vld [vmem:[%s192 + $0x188] sm:$0xff]
      %v250 = vld [vmem:[%s192 + $0x190] sm:$0xff]
      %v251 = vld [vmem:[%s192 + $0x198] sm:$0xff]
      %v252 = vld [vmem:[%s192 + $0x1a0] sm:$0xff]
      %v253 = vld [vmem:[%s192 + $0x1a8] sm:$0xff]
      %v254 = vld [vmem:[%s192 + $0x1b0] sm:$0xff]
      %v255 = vld [vmem:[%s192 + $0x1b8] sm:$0xff]
      %v256 = vld [vmem:[%s192 + $0x1c0] sm:$0xff]
      %v257 = vld [vmem:[%s192 + $0x1c8] sm:$0xff]
      %v258 = vld [vmem:[%s192 + $0x1d0] sm:$0xff]
      %v259 = vld [vmem:[%s192 + $0x1d8] sm:$0xff]
      %v260 = vld [vmem:[%s192 + $0x1e0] sm:$0xff]
      %v261 = vld [vmem:[%s192 + $0x1e8] sm:$0xff]
      %v262 = vld [vmem:[%s192 + $0x1f0] sm:$0xff]
      %v263 = vld [vmem:[%s192 + $0x1f8] sm:$0xff]
      %s264 = sld [smem:[#allocation2]]
      %v265 = vstv %s264
      %v267 = vlaneseq
      %v268 = vshrl.u32 %v267, 7
      %v269 = vsub.s32 0, %v268
      %v270 = vrot.slane %v199, %v269
      %v271 = vlaneseq
      %v272 = vshrl.u32 %v271, 7
      %v273 = vsub.s32 1, %v272
      %v274 = vrot.slane %v199, %v273
      %v275 = vlaneseq
      %v276 = vshrl.u32 %v275, 7
      %v277 = vsub.s32 2, %v276
      %v278 = vrot.slane %v199, %v277
      %v279 = vlaneseq
      %v280 = vshrl.u32 %v279, 7
      %v281 = vsub.s32 3, %v280
      %v282 = vrot.slane %v199, %v281
      %287 = vmatprep.subr.mxu0 0.0
      %288 = vmatpush1.msra.mxu0 %v215
      %289 = vmatprep.subr.mxu0 0.0
      %290 = vmatpush1.msra.mxu0 %v214
      %291 = vmatprep.subr.mxu0 0.0
      %292 = vmatpush1.msra.mxu0 %v213
      %293 = vmatprep.subr.mxu0 0.0
      %294 = vmatpush1.msra.mxu0 %v212
      %295 = vmatprep.subr.mxu0 0.0
      %296 = vmatpush1.msra.mxu0 %v211
      %297 = vmatprep.subr.mxu0 0.0
      %298 = vmatpush1.msra.mxu0 %v210
      %299 = vmatprep.subr.mxu0 0.0
      %300 = vmatpush1.msra.mxu0 %v209
      %301 = vmatprep.subr.mxu0 0.0
      %302 = vmatpush1.msra.mxu0 %v208
      %303 = vmatprep.subr.mxu0 0.0
      %304 = vmatpush1.msra.mxu0 %v207
      %305 = vmatprep.subr.mxu0 0.0
      %306 = vmatpush1.msra.mxu0 %v206
      %307 = vmatprep.subr.mxu0 0.0
      %308 = vmatpush1.msra.mxu0 %v205
      %309 = vmatprep.subr.mxu0 0.0
      %310 = vmatpush1.msra.mxu0 %v204
      %311 = vmatprep.subr.mxu0 0.0
      %312 = vmatpush1.msra.mxu0 %v203
      %313 = vmatprep.subr.mxu0 0.0
      %314 = vmatpush1.msra.mxu0 %v202
      %315 = vmatprep.subr.mxu0 0.0
      %316 = vmatpush1.msra.mxu0 %v201
      %317 = vmatprep.subr.mxu0 0.0
      %318 = vmatpush1.msra.mxu0 %v200
      %319 = vmatprep.subr.mxu0 0.0
      %320 = vmatpush2.msra.mxu0 %v231
      %321 = vmatprep.subr.mxu0 0.0
      %322 = vmatpush2.msra.mxu0 %v230
      %323 = vmatprep.subr.mxu0 0.0
      %324 = vmatpush2.msra.mxu0 %v229
      %325 = vmatprep.subr.mxu0 0.0
      %326 = vmatpush2.msra.mxu0 %v228
      %327 = vmatprep.subr.mxu0 0.0
      %328 = vmatpush2.msra.mxu0 %v227
      %329 = vmatprep.subr.mxu0 0.0
      %330 = vmatpush2.msra.mxu0 %v226
      %331 = vmatprep.subr.mxu0 0.0
      %332 = vmatpush2.msra.mxu0 %v225
      %333 = vmatprep.subr.mxu0 0.0
      %334 = vmatpush2.msra.mxu0 %v224
      %335 = vmatprep.subr.mxu0 0.0
      %336 = vmatpush2.msra.mxu0 %v223
      %337 = vmatprep.subr.mxu0 0.0
      %338 = vmatpush2.msra.mxu0 %v222
      %339 = vmatprep.subr.mxu0 0.0
      %340 = vmatpush2.msra.mxu0 %v221
      %341 = vmatprep.subr.mxu0 0.0
      %342 = vmatpush2.msra.mxu0 %v220
      %343 = vmatprep.subr.mxu0 0.0
      %344 = vmatpush2.msra.mxu0 %v219
      %345 = vmatprep.subr.mxu0 0.0
      %346 = vmatpush2.msra.mxu0 %v218
      %347 = vmatprep.subr.mxu0 0.0
      %348 = vmatpush2.msra.mxu0 %v217
      %349 = vmatprep.subr.mxu0 0.0
      %350 = vmatpush2.msra.mxu0 %v216
      %351 = vmatprep.mubr.f32.mxu0 %v274
      %352 = vmatmul.mubr.f32.gmra.mxu0 %v270
      %v353 = vpop.f32.mrf.mxu0
      %v354 = vadd.f32 %v265, %v353
      %v355 = vpop.f32.mrf.mxu0
      %356 = vdwg.mxu0
      %357 = vmatprep.subr.mxu0 0.0
      %358 = vmatpush1.msra.mxu0 %v247
      %359 = vmatprep.subr.mxu0 0.0
      %360 = vmatpush1.msra.mxu0 %v246
      %361 = vmatprep.subr.mxu0 0.0
      %362 = vmatpush1.msra.mxu0 %v245
      %363 = vmatprep.subr.mxu0 0.0
      %364 = vmatpush1.msra.mxu0 %v244
      %365 = vmatprep.subr.mxu0 0.0
      %366 = vmatpush1.msra.mxu0 %v243
      %367 = vmatprep.subr.mxu0 0.0
      %368 = vmatpush1.msra.mxu0 %v242
      %369 = vmatprep.subr.mxu0 0.0
      %370 = vmatpush1.msra.mxu0 %v241
      %371 = vmatprep.subr.mxu0 0.0
      %372 = vmatpush1.msra.mxu0 %v240
      %373 = vmatprep.subr.mxu0 0.0
      %374 = vmatpush1.msra.mxu0 %v239
      %375 = vmatprep.subr.mxu0 0.0
      %376 = vmatpush1.msra.mxu0 %v238
      %377 = vmatprep.subr.mxu0 0.0
      %378 = vmatpush1.msra.mxu0 %v237
      %379 = vmatprep.subr.mxu0 0.0
      %380 = vmatpush1.msra.mxu0 %v236
      %381 = vmatprep.subr.mxu0 0.0
      %382 = vmatpush1.msra.mxu0 %v235
      %383 = vmatprep.subr.mxu0 0.0
      %384 = vmatpush1.msra.mxu0 %v234
      %385 = vmatprep.subr.mxu0 0.0
      %386 = vmatpush1.msra.mxu0 %v233
      %387 = vmatprep.subr.mxu0 0.0
      %388 = vmatpush1.msra.mxu0 %v232
      %389 = vmatprep.subr.mxu0 0.0
      %390 = vmatpush2.msra.mxu0 %v263
      %391 = vmatprep.subr.mxu0 0.0
      %392 = vmatpush2.msra.mxu0 %v262
      %393 = vmatprep.subr.mxu0 0.0
      %394 = vmatpush2.msra.mxu0 %v261
      %395 = vmatprep.subr.mxu0 0.0
      %396 = vmatpush2.msra.mxu0 %v260
      %397 = vmatprep.subr.mxu0 0.0
      %398 = vmatpush2.msra.mxu0 %v259
      %399 = vmatprep.subr.mxu0 0.0
      %400 = vmatpush2.msra.mxu0 %v258
      %401 = vmatprep.subr.mxu0 0.0
      %402 = vmatpush2.msra.mxu0 %v257
      %403 = vmatprep.subr.mxu0 0.0
      %404 = vmatpush2.msra.mxu0 %v256
      %405 = vmatprep.subr.mxu0 0.0
      %406 = vmatpush2.msra.mxu0 %v255
      %407 = vmatprep.subr.mxu0 0.0
      %408 = vmatpush2.msra.mxu0 %v254
      %409 = vmatprep.subr.mxu0 0.0
      %410 = vmatpush2.msra.mxu0 %v253
      %411 = vmatprep.subr.mxu0 0.0
      %412 = vmatpush2.msra.mxu0 %v252
      %413 = vmatprep.subr.mxu0 0.0
      %414 = vmatpush2.msra.mxu0 %v251
      %415 = vmatprep.subr.mxu0 0.0
      %416 = vmatpush2.msra.mxu0 %v250
      %417 = vmatprep.subr.mxu0 0.0
      %418 = vmatpush2.msra.mxu0 %v249
      %419 = vmatprep.subr.mxu0 0.0
      %420 = vmatpush2.msra.mxu0 %v248
      %421 = vmatprep.mubr.f32.mxu0 %v282
      %422 = vmatmul.mubr.f32.gmra.mxu0 %v278
      %v423 = vpop.f32.mrf.mxu0
      %v424 = vadd.f32 %v354, %v423
      %v425 = vpop.f32.mrf.mxu0
      %426 = vdwg.mxu0
      %427 = vst [vmem:[%s198] sm:$0x1] %v424
      %p428 = scmp.lt.s32.totalorder %s19, 1
      %s429 = scalar_select %p428, %s19, 1
      %p430 = scmp.lt.s32.totalorder %s20, 0
      %s431 = scalar_select %p430, %s20, 0
      %s432 = sadd.s32 %s431, %s429
      %s433 = scalar_lea.vmem %s3, %s432
      // Predicated region
      $region33: #{ddff_decoder_dummy_forward.1} parent=31 // pred_check
        %p434 = pneg %p117
      $region34: #{ddff_decoder_dummy_forward.1} parent=31 // pred_check_branch
        %436 = sbr.rel (%p434) target = $region36
      $region35: #{ddff_decoder_dummy_forward.1} parent=31 // pred_region
        _
      $region36: #{ddff_decoder_dummy_forward.1} parent=31 // pred_fallthru
        _
    $region32: #{ddff_decoder_dummy_forward.1} parent=5 // pred_fallthru
      _
    %p437 = scmp.le.s32.totalorder 2, %s10
    // Predicated region
    $region37: #{ddff_decoder_dummy_forward.1} parent=5 // pred_check
      %p438 = pneg %p437
    $region38: #{ddff_decoder_dummy_forward.1} parent=5 // pred_check_branch
      %440 = sbr.rel (%p438) target = $region40
    $region39: #{ddff_decoder_dummy_forward.1} parent=5 // pred_region
      %s441 = ssub.s32 %s10, 2
      // Predicated region
      $region41: #{ddff_decoder_dummy_forward.1} parent=39 // pred_check
        %p442 = pneg %p123
      $region42: #{ddff_decoder_dummy_forward.1} parent=39 // pred_check_branch
        %444 = sbr.rel (%p442) target = $region44
      $region43: #{ddff_decoder_dummy_forward.1} parent=39 // pred_region
        %p445 = scmp.lt.s32.totalorder %s21, 1
        %s446 = scalar_select %p445, %s21, 1
        %p447 = scmp.lt.s32.totalorder %s22, 0
        %s448 = scalar_select %p447, %s22, 0
        %s449 = sadd.s32 %s448, %s446
        %s450 = scalar_lea.vmem %s3, %s449
      $region44: #{ddff_decoder_dummy_forward.1} parent=39 // pred_fallthru
        _
    $region40: #{ddff_decoder_dummy_forward.1} parent=5 // pred_fallthru
      _
  $region6: #{ddff_decoder_dummy_forward.1} parent=0 // loop_footer
    %s14 = sadd.s32 1, %s10
  $region7: #{ddff_decoder_dummy_forward.1} parent=0 // loop_footer_branch
    %9 = sbr.rel target = $region3
  $region8: #{ddff_decoder_dummy_forward.1} parent=0 // loop_exit
    _

</llo_original>
